<compile_context>
chip_gen: v7x
topology: tpu7x:2x2x1
jax: 0.10.0
libtpu: 0.0.40
codegen_flags: <defaults>
</compile_context>

<pallas_src>
import functools

import jax
import jax.numpy as jnp
import numpy as np
from jax import lax
from jax.experimental import pallas as pl
from jax.experimental.pallas import tpu as pltpu


# ------------------------------- Pallas kernel -------------------------------

def _gemm_bias_relu_kernel(x_ref, w_ref, b_ref, o_ref):
    """o = relu(x @ w + b).

    x:(tm,K) bf16 im2col slab (shortcut columns appended for conv2),
    w:(K,Np) bf16 with BN scale pre-folded, b:(1,Np) f32, o:(tm,Np) bf16.
    MXU accumulates f32; bias add + ReLU stay f32; single lane-dense store.
    """
    acc = jnp.dot(x_ref[...], w_ref[...], preferred_element_type=jnp.float32)
    o_ref[...] = jnp.maximum(acc + b_ref[...], 0.0).astype(o_ref.dtype)


# ------------------------------- small helpers -------------------------------

def _round_up(x, m):
    return ((x + m - 1) // m) * m


def _pad_last(a, target):
    pad = target - a.shape[-1]
    if pad == 0:
        return a
    return jnp.pad(a, [(0, 0)] * (a.ndim - 1) + [(0, pad)])


@functools.lru_cache(maxsize=None)
def _vmem_caps():
    """(vmem_limit_bytes, planning_budget_bytes), generation aware."""
    cap = 64 * 1024 * 1024                       # conservative default (v7x-sized)
    try:
        info = pltpu.get_tpu_info()
        cap = int(getattr(info, "vmem_capacity_bytes", cap))
    except Exception:
        pass
    if cap >= 100 * 1024 * 1024:                 # v5e / v6e: 128 MiB VMEM
        limit = 96 * 1024 * 1024
    else:                                        # v7x: 64 MiB VMEM per TensorCore
        limit = 38 * 1024 * 1024
    return limit, limit - 6 * 1024 * 1024        # headroom for internal scratch


def _fit_tm(M, row_in_bytes, row_out_bytes, resident_bytes, budget, cap=512):
    """Pick an M tile: big (amortize ~0.35us/step), multiple of 16, >= 4 grid
    steps when possible (>= 2 per v7x TensorCore), within the VMEM budget
    including the 2x double-buffering of the streamed input/output tiles."""
    tm = min(cap, max(16, _round_up(pl.cdiv(M, 4), 16)))
    while tm > 16 and resident_bytes + 2 * tm * (row_in_bytes + row_out_bytes) > budget:
        tm = max(16, _round_up(tm // 2, 16))
    return tm


# ----------------------------- pallas_call wrapper ----------------------------

def _fused_gemm_bias_relu(slab, w, bias, out_dtype=jnp.bfloat16):
    """relu(slab @ w + bias); rows tiled over the grid, w/bias VMEM-resident."""
    M, K = slab.shape
    Np = w.shape[-1]
    limit, budget = _vmem_caps()
    in_b = slab.dtype.itemsize
    w_b = w.dtype.itemsize
    out_b = jnp.dtype(out_dtype).itemsize
    # Constant-index blocks are still double-buffered by the pipeline -> 2x.
    resident = 2 * (K * Np * w_b + Np * 4)
    tm = _fit_tm(M, row_in_bytes=K * in_b, row_out_bytes=Np * out_b,
                 resident_bytes=resident, budget=budget)
    Mp = _round_up(M, tm)
    if Mp != M:                                   # skipped when M is a tile multiple
        slab = jnp.pad(slab, ((0, Mp - M), (0, 0)))
    cost = pl.CostEstimate(
        flops=2 * Mp * K * Np,
        transcendentals=0,
        bytes_accessed=Mp * K * in_b + K * Np * w_b + Np * 4 + Mp * Np * out_b)
    out = pl.pallas_call(
        _gemm_bias_relu_kernel,
        out_shape=jax.ShapeDtypeStruct((Mp, Np), out_dtype),
        grid=(Mp // tm,),
        in_specs=[
            pl.BlockSpec((tm, K), lambda i: (i, 0)),
            pl.BlockSpec((K, Np), lambda i: (0, 0)),
            pl.BlockSpec((1, Np), lambda i: (0, 0)),
        ],
        out_specs=pl.BlockSpec((tm, Np), lambda i: (i, 0)),
        compiler_params=pltpu.CompilerParams(
            dimension_semantics=("parallel",),
            vmem_limit_bytes=limit),
        cost_estimate=cost,
    )(slab, w, bias)
    return out if Mp == M else out[:M]


# -------------------------------- JAX-side glue -------------------------------

def _im2col_slab(x_nhwc, stride, extra=None):
    """3x3 / pad-1 patch slab (M, 9*C [+ C_extra]) in bf16.

    Tap order kh*3+kw, channels fastest within a tap (matches _w_mat_3x3).
    `extra` (the shortcut activations) is appended inside the SAME
    concatenation, so merging the shortcut GEMM costs no extra HBM copy.
    # TODO(synk): replace with in-kernel halo-DMA im2col (see file header).
    """
    N, H, W, C = x_nhwc.shape
    xp = jnp.pad(x_nhwc, ((0, 0), (1, 1), (1, 1), (0, 0)))
    Hout = (H - 1) // stride + 1
    Wout = (W - 1) // stride + 1
    M = N * Hout * Wout
    cols = []
    for kh in range(3):
        for kw in range(3):
            patch = lax.slice(
                xp, (0, kh, kw, 0),
                (N, kh + (Hout - 1) * stride + 1, kw + (Wout - 1) * stride + 1, C),
                (1, stride, stride, 1))
            cols.append(patch.reshape(M, C))
    if extra is not None:
        cols.append(extra.reshape(M, -1))
    return jnp.concatenate(cols, axis=-1).astype(jnp.bfloat16), (N, Hout, Wout)


def _fold_bn(stats, eps=1e-5):
    gamma, beta, mean, var = stats
    scale = gamma / jnp.sqrt(var + eps)
    return scale, beta - mean * scale


def _w_mat_3x3(w_oihw, scale):
    """(Cout,Cin,3,3) -> (9*Cin, Cout) f32, BN scale folded into each column."""
    cout, cin, kh, kw = w_oihw.shape
    w = jnp.transpose(w_oihw, (2, 3, 1, 0)).reshape(kh * kw * cin, cout)
    return w * scale[None, :]


@functools.partial(jax.jit, static_argnames=("stride", "has_proj"))
def basic_block_forward_nhwc(x_nhwc, params, stride, has_proj):
    """BasicBlock forward, NHWC in -> NHWC bf16 out.  Chained blocks should use
    this entry point so NCHW<->NHWC transposes are paid only at the ends."""
    N, H, W, Cin = x_nhwc.shape
    planes = params["w1"].shape[0]
    Np = _round_up(planes, 128)                       # lane-dense Cout
    x_bf = x_nhwc.astype(jnp.bfloat16)

    # conv1 (3x3, stride) + bn1 + relu  — one GEMM, K = 9*Cin.
    s1, b1 = _fold_bn(params["bn1"])
    w1 = _pad_last(_w_mat_3x3(params["w1"], s1), Np).astype(jnp.bfloat16)
    bias1 = _pad_last(b1.reshape(1, -1), Np).astype(jnp.float32)
    slab1, (_, Hout, Wout) = _im2col_slab(x_bf, stride)
    h = _fused_gemm_bias_relu(slab1, w1, bias1)                  # (M, Np) bf16
    h_nhwc = h[:, :planes].reshape(N, Hout, Wout, planes)

    # conv2 (3x3, stride 1) + bn2 + shortcut + relu — ONE merged GEMM,
    # K = 9*planes + Cin.  Shortcut activations are the last Cin slab columns;
    # their weight is the scaled 1x1 projection (proj path) or an exact bf16
    # identity (identity path), so the residual add happens inside the same
    # f32 MXU accumulation — no separate residual stream or second dot.
    s2, b2 = _fold_bn(params["bn2"])
    w2_main = _w_mat_3x3(params["w2"], s2)                       # (9*planes, planes)
    if has_proj:
        ssc, bsc = _fold_bn(params["bnsc"])
        w_sc = params["wsc"][:, :, 0, 0].T * ssc[None, :]        # (Cin, planes)
        bias2 = b2 + bsc
        x_sc = x_bf[:, ::stride, ::stride, :]                    # (N,Hout,Wout,Cin)
    else:                                                        # stride==1, Cin==planes
        w_sc = jnp.eye(planes, dtype=jnp.float32)
        bias2 = b2
        x_sc = x_bf
    w2 = _pad_last(jnp.concatenate([w2_main, w_sc], axis=0), Np).astype(jnp.bfloat16)
    bias2 = _pad_last(bias2.reshape(1, -1), Np).astype(jnp.float32)
    slab2, _ = _im2col_slab(h_nhwc, 1, extra=x_sc)
    out = _fused_gemm_bias_relu(slab2, w2, bias2)                # (M, Np) bf16
    return out[:, :planes].reshape(N, Hout, Wout, planes)


def basic_block_forward(x_nchw, params, stride, has_proj):
    """PyTorch-layout entry point: (N,Cin,H,W) f32 -> (N,Cout,Hout,Wout) f32."""
    x_nhwc = jnp.transpose(x_nchw, (0, 2, 3, 1))
    out = basic_block_forward_nhwc(x_nhwc, params, stride=stride, has_proj=has_proj)
    return jnp.transpose(out, (0, 3, 1, 2)).astype(jnp.float32)


# ------------------------------ pure-JAX reference ----------------------------

def _ref_forward(x_nchw, params, stride, has_proj, eps=1e-5):
    """Reference mirroring the kernels' mixed-precision policy: eval-mode BN
    folded into bf16 weights, f32 accumulation/epilogue, bf16 h / output,
    bf16-rounded identity residual."""
    bf = jnp.bfloat16

    def fold(stats):
        g, b, m, v = stats
        s = g / jnp.sqrt(v + eps)
        return s, b - m * s

    def conv(x, w, scale, stride_, pad):
        w_sc = (w * scale[:, None, None, None]).astype(bf)
        return lax.conv_general_dilated(
            x.astype(bf), w_sc, (stride_, stride_), ((pad, pad), (pad, pad)),
            dimension_numbers=("NCHW", "OIHW", "NCHW"),
            preferred_element_type=jnp.float32)

    s1, b1 = fold(params["bn1"])
    s2, b2 = fold(params["bn2"])
    h = jax.nn.relu(conv(x_nchw, params["w1"], s1, stride, 1)
                    + b1[None, :, None, None]).astype(bf)
    out = conv(h, params["w2"], s2, 1, 1) + b2[None, :, None, None]
    if has_proj:
        ssc, bsc = fold(params["bnsc"])
        sc = conv(x_nchw, params["wsc"], ssc, stride, 0) + bsc[None, :, None, None]
    else:
        sc = x_nchw.astype(bf).astype(jnp.float32)
    return jax.nn.relu(out + sc).astype(bf).astype(jnp.float32)


# ------------------------------- param builder --------------------------------

def make_basic_block_params(key, in_planes, planes, stride):
    keys = jax.random.split(key, 6)

    def conv_w(k, cout, cin, ksz):
        fan_in = cin * ksz * ksz
        return (jax.random.normal(k, (cout, cin, ksz, ksz), jnp.float32)
                * np.sqrt(2.0 / fan_in))

    def bn_p(k, c):
        k1, k2, k3, k4 = jax.random.split(k, 4)
        gamma = 1.0 + 0.1 * jax.random.normal(k1, (c,), jnp.float32)
        beta = 0.1 * jax.random.normal(k2, (c,), jnp.float32)
        mean = 0.1 * jax.random.normal(k3, (c,), jnp.float32)
        var = jnp.abs(jax.random.normal(k4, (c,), jnp.float32)) + 0.5
        return gamma, beta, mean, var

    params = {
        "w1": conv_w(keys[0], planes, in_planes, 3),
        "bn1": bn_p(keys[1], planes),
        "w2": conv_w(keys[2], planes, planes, 3),
        "bn2": bn_p(keys[3], planes),
    }
    has_proj = (stride != 1) or (in_planes != planes)
    if has_proj:
        params["wsc"] = conv_w(keys[4], planes, in_planes, 1)
        params["bnsc"] = bn_p(keys[5], planes)
    return params, has_proj


# ------------------------------------ main ------------------------------------

if __name__ == "__main__":
    root = jax.random.PRNGKey(0)
    k1, k2, k3, k4 = jax.random.split(root, 4)

    # Case 1: projection shortcut (stride=2, channel change), x: (2, 4, 16, 16)
    x = jax.random.normal(k1, (2, 4, 16, 16), jnp.float32)
    params, has_proj = make_basic_block_params(k2, in_planes=4, planes=8, stride=2)
    out = jax.block_until_ready(basic_block_forward(x, params, 2, has_proj))
    ref = _ref_forward(x, params, 2, has_proj)
    np.testing.assert_allclose(np.asarray(out), np.asarray(ref),
                               rtol=2e-2, atol=2e-2)

    # Case 2: identity shortcut (stride=1, in_planes == planes)
    x2 = jax.random.normal(k3, (2, 4, 16, 16), jnp.float32)
    params2, has_proj2 = make_basic_block_params(k4, in_planes=4, planes=4, stride=1)
    out2 = jax.block_until_ready(basic_block_forward(x2, params2, 1, has_proj2))
    ref2 = _ref_forward(x2, params2, 1, has_proj2)
    np.testing.assert_allclose(np.asarray(out2), np.asarray(ref2),
                               rtol=2e-2, atol=2e-2)

    print("KERNEL_OK")
</pallas_src>

<mosaic_0001>
module attributes {stable_mosaic.version = 11 : i64} {
  func.func @_gemm_bias_relu_kernel(%arg0: i32, %arg1: memref<32x36xbf16, #tpu.memory_space<vmem>>, %arg2: memref<36x128xbf16, #tpu.memory_space<vmem>>, %arg3: memref<1x128xf32, #tpu.memory_space<vmem>>, %arg4: memref<32x128xbf16, #tpu.memory_space<vmem>>) attributes {dimension_semantics = [#tpu.dimension_semantics<parallel>], iteration_bounds = array<i64: 4>, scalar_prefetch = 0 : i64, scratch_operands = 0 : i64, tpu.core_type = #tpu.core_type<tc>, window_params = [{transform_indices = @transform_0, window_bounds = array<i64: 32, 36>}, {pipeline_mode = #tpu.pipeline_mode<synchronous>, transform_indices = @transform_1, window_bounds = array<i64: 36, 128>}, {pipeline_mode = #tpu.pipeline_mode<synchronous>, transform_indices = @transform_2, window_bounds = array<i64: 1, 128>}, {transform_indices = @transform_3, window_bounds = array<i64: 32, 128>}]} {
    %c0 = arith.constant 0 : index
    %c0_0 = arith.constant 0 : index
    %0 = vector.load %arg1[%c0, %c0_0] : memref<32x36xbf16, #tpu.memory_space<vmem>>, vector<32x36xbf16>
    %c0_1 = arith.constant 0 : index
    %c0_2 = arith.constant 0 : index
    %1 = vector.load %arg2[%c0_1, %c0_2] : memref<36x128xbf16, #tpu.memory_space<vmem>>, vector<36x128xbf16>
    %cst = arith.constant dense<0.000000e+00> : vector<32x128xf32>
    %2 = tpu.matmul %0, %1, %cst {dimension_numbers = #tpu.dot_dimension_numbers<[1], [0], [0], [1], [0, 0, 1, 1], [], []>} : vector<32x36xbf16>, vector<36x128xbf16>, vector<32x128xf32> -> vector<32x128xf32>
    %c0_3 = arith.constant 0 : index
    %c0_4 = arith.constant 0 : index
    %3 = vector.load %arg3[%c0_3, %c0_4] : memref<1x128xf32, #tpu.memory_space<vmem>>, vector<1x128xf32>
    %4 = vector.broadcast %3 : vector<1x128xf32> to vector<32x128xf32>
    %5 = arith.addf %2, %4 : vector<32x128xf32>
    %cst_5 = arith.constant 0.000000e+00 : f32
    %6 = vector.broadcast %cst_5 : f32 to vector<32x128xf32>
    %7 = arith.maximumf %5, %6 : vector<32x128xf32>
    %8 = arith.truncf %7 : vector<32x128xf32> to vector<32x128xbf16>
    %c0_6 = arith.constant 0 : index
    %c0_7 = arith.constant 0 : index
    %9 = vector.load %arg4[%c0_6, %c0_7] : memref<32x128xbf16, #tpu.memory_space<vmem>>, vector<32x128xbf16>
    tpu.vector_store %arg4[%c0_6, %c0_7], %8 {strides = array<i32>} : memref<32x128xbf16, #tpu.memory_space<vmem>>, vector<32x128xbf16>,
    return
  }
  func.func @transform_0(%arg0: i32) -> (i32, i32) {
    %c0_i32 = arith.constant 0 : i32
    %c0_i32_0 = arith.constant 0 : i32
    return %arg0, %c0_i32 : i32, i32
  }
  func.func @transform_1(%arg0: i32) -> (i32, i32) {
    %c0_i32 = arith.constant 0 : i32
    %c0_i32_0 = arith.constant 0 : i32
    %c0_i32_1 = arith.constant 0 : i32
    return %c0_i32, %c0_i32_0 : i32, i32
  }
  func.func @transform_2(%arg0: i32) -> (i32, i32) {
    %c0_i32 = arith.constant 0 : i32
    %c0_i32_0 = arith.constant 0 : i32
    %c0_i32_1 = arith.constant 0 : i32
    return %c0_i32, %c0_i32_0 : i32, i32
  }
  func.func @transform_3(%arg0: i32) -> (i32, i32) {
    %c0_i32 = arith.constant 0 : i32
    %c0_i32_0 = arith.constant 0 : i32
    return %arg0, %c0_i32 : i32, i32
  }
}

module attributes {stable_mosaic.version = 11 : i64} {
  func.func @_gemm_bias_relu_kernel(%arg0: i32, %arg1: memref<32x76xbf16, #tpu.memory_space<vmem>>, %arg2: memref<76x128xbf16, #tpu.memory_space<vmem>>, %arg3: memref<1x128xf32, #tpu.memory_space<vmem>>, %arg4: memref<32x128xbf16, #tpu.memory_space<vmem>>) attributes {dimension_semantics = [#tpu.dimension_semantics<parallel>], iteration_bounds = array<i64: 4>, scalar_prefetch = 0 : i64, scratch_operands = 0 : i64, tpu.core_type = #tpu.core_type<tc>, window_params = [{transform_indices = @transform_0, window_bounds = array<i64: 32, 76>}, {pipeline_mode = #tpu.pipeline_mode<synchronous>, transform_indices = @transform_1, window_bounds = array<i64: 76, 128>}, {pipeline_mode = #tpu.pipeline_mode<synchronous>, transform_indices = @transform_2, window_bounds = array<i64: 1, 128>}, {transform_indices = @transform_3, window_bounds = array<i64: 32, 128>}]} {
    %c0 = arith.constant 0 : index
    %c0_0 = arith.constant 0 : index
    %0 = vector.load %arg1[%c0, %c0_0] : memref<32x76xbf16, #tpu.memory_space<vmem>>, vector<32x76xbf16>
    %c0_1 = arith.constant 0 : index
    %c0_2 = arith.constant 0 : index
    %1 = vector.load %arg2[%c0_1, %c0_2] : memref<76x128xbf16, #tpu.memory_space<vmem>>, vector<76x128xbf16>
    %cst = arith.constant dense<0.000000e+00> : vector<32x128xf32>
    %2 = tpu.matmul %0, %1, %cst {dimension_numbers = #tpu.dot_dimension_numbers<[1], [0], [0], [1], [0, 0, 1, 1], [], []>} : vector<32x76xbf16>, vector<76x128xbf16>, vector<32x128xf32> -> vector<32x128xf32>
    %c0_3 = arith.constant 0 : index
    %c0_4 = arith.constant 0 : index
    %3 = vector.load %arg3[%c0_3, %c0_4] : memref<1x128xf32, #tpu.memory_space<vmem>>, vector<1x128xf32>
    %4 = vector.broadcast %3 : vector<1x128xf32> to vector<32x128xf32>
    %5 = arith.addf %2, %4 : vector<32x128xf32>
    %cst_5 = arith.constant 0.000000e+00 : f32
    %6 = vector.broadcast %cst_5 : f32 to vector<32x128xf32>
    %7 = arith.maximumf %5, %6 : vector<32x128xf32>
    %8 = arith.truncf %7 : vector<32x128xf32> to vector<32x128xbf16>
    %c0_6 = arith.constant 0 : index
    %c0_7 = arith.constant 0 : index
    %9 = vector.load %arg4[%c0_6, %c0_7] : memref<32x128xbf16, #tpu.memory_space<vmem>>, vector<32x128xbf16>
    tpu.vector_store %arg4[%c0_6, %c0_7], %8 {strides = array<i32>} : memref<32x128xbf16, #tpu.memory_space<vmem>>, vector<32x128xbf16>,
    return
  }
  func.func @transform_0(%arg0: i32) -> (i32, i32) {
    %c0_i32 = arith.constant 0 : i32
    %c0_i32_0 = arith.constant 0 : i32
    return %arg0, %c0_i32 : i32, i32
  }
  func.func @transform_1(%arg0: i32) -> (i32, i32) {
    %c0_i32 = arith.constant 0 : i32
    %c0_i32_0 = arith.constant 0 : i32
    %c0_i32_1 = arith.constant 0 : i32
    return %c0_i32, %c0_i32_0 : i32, i32
  }
  func.func @transform_2(%arg0: i32) -> (i32, i32) {
    %c0_i32 = arith.constant 0 : i32
    %c0_i32_0 = arith.constant 0 : i32
    %c0_i32_1 = arith.constant 0 : i32
    return %c0_i32, %c0_i32_0 : i32, i32
  }
  func.func @transform_3(%arg0: i32) -> (i32, i32) {
    %c0_i32 = arith.constant 0 : i32
    %c0_i32_0 = arith.constant 0 : i32
    return %arg0, %c0_i32 : i32, i32
  }
}

</mosaic_0001>

<llo_original>
// kernel: basic_block_forward_nhwc.2
$region0: #{basic_block_forward_nhwc.2}
  #allocation0 [shape = 'u32[]', space=smem, size = 0x4, offset = 0x4, fixed_abs, tag = 'smem constant byte address 0x4 - core index']
  #allocation1 [shape = 'u32[144,128]{1,0:T(1,128)}', space=vmem, size = 0x12000, scoped, tag = 'internal scratch']
  %s0 = inlined_call_operand.vmem [shape: bf16[128,36], index: 0, kind: input, shape index: {}]
  %s1 = inlined_call_operand.vmem [shape: bf16[36,128], index: 1, kind: input, shape index: {}]
  %s2 = inlined_call_operand.vmem [shape: f32[1,128], index: 2, kind: input, shape index: {}]
  %s3 = inlined_call_operand.vmem [shape: bf16[128,128], index: 3, kind: output, shape index: {}]
  %s4 = sld [smem:[#allocation0]]
  $region45: #{basic_block_forward_nhwc.2} parent=0
    _
  %s6 = ssub.s32 1, %s4
  %s7 = scalar_select 0, %s6, %s4
  loop: start=0, step=1, limit=6
  $region2: #{basic_block_forward_nhwc.2} parent=0 // loop_pre_header
    _
  $region3: #{basic_block_forward_nhwc.2} parent=0 // loop_header
    %s9 = sphi 0, %s13
    %p10 = scmp.ge.s32.totalorder %s9, 6
    %s19 = sphi 0, %s21
    %s22 = sphi 0, %s19
    %s23 = sphi 0, %s22
    %s39 = sphi 0, %s23
    %s43 = sphi 0, %s43
    %s45 = sphi 0, %s43
    %s46 = sphi 0, %s45
    %s60 = sphi 0, %s46
    %s64 = sphi 0, %s64
    %s66 = sphi 0, %s64
    %s67 = sphi 0, %s66
    %s81 = sphi 0, %s67
    %s87 = sphi 0, %s89
    %s90 = sphi 0, %s87
    %s91 = sphi 0, %s90
    %s107 = sphi 0, %s91
  $region4: #{basic_block_forward_nhwc.2} parent=0 // loop_header_branch
    %12 = sbr.rel (%p10) target = $region8
  $region5: #{basic_block_forward_nhwc.2} parent=0 // loop_body
    %s14 = ssub.s32 %s9, 1
    %s15 = ssub.s32 %s9, 2
    %s16 = sadd.s32 %s9, 1
    %s17 = ssub.s32 %s9, %s16
    %p18 = scmp.eq.s32.totalorder %s17, 0
    %s20 = sadd.s32 %s19, 1
    %s21 = scalar_select %p18, %s19, %s20
    %p24 = pneg %p18
    %p25 = scmp.eq.s32.totalorder %s9, 3
    %p26 = por %p24, %p25
    %p27 = scmp.ne.s32.totalorder %s19, %s22
    %p28 = scmp.eq.s32.totalorder %s9, 0
    %p29 = por %p27, %p28
    %p30 = scmp.ne.s32.totalorder %s19, %s22
    %p31 = scmp.eq.s32.totalorder %s14, 3
    %p32 = por %p30, %p31
    %p33 = scmp.ne.s32.totalorder %s22, %s23
    %p34 = scmp.eq.s32.totalorder %s14, 0
    %p35 = por %p33, %p34
    %p36 = scmp.ne.s32.totalorder %s22, %s23
    %p37 = scmp.eq.s32.totalorder %s15, 3
    %p38 = por %p36, %p37
    %p40 = scmp.ne.s32.totalorder %s23, %s39
    %p41 = scmp.eq.s32.totalorder %s15, 0
    %p42 = por %p40, %p41
    %s44 = sadd.s32 %s43, 1
    %p47 = scmp.eq.s32.totalorder %s9, 3
    %p48 = scmp.ne.s32.totalorder %s43, %s45
    %p49 = scmp.eq.s32.totalorder %s9, 0
    %p50 = por %p48, %p49
    %p51 = scmp.ne.s32.totalorder %s43, %s45
    %p52 = scmp.eq.s32.totalorder %s14, 3
    %p53 = por %p51, %p52
    %p54 = scmp.ne.s32.totalorder %s45, %s46
    %p55 = scmp.eq.s32.totalorder %s14, 0
    %p56 = por %p54, %p55
    %p57 = scmp.ne.s32.totalorder %s45, %s46
    %p58 = scmp.eq.s32.totalorder %s15, 3
    %p59 = por %p57, %p58
    %p61 = scmp.ne.s32.totalorder %s46, %s60
    %p62 = scmp.eq.s32.totalorder %s15, 0
    %p63 = por %p61, %p62
    %s65 = sadd.s32 %s64, 1
    %p68 = scmp.eq.s32.totalorder %s9, 3
    %p69 = scmp.ne.s32.totalorder %s64, %s66
    %p70 = scmp.eq.s32.totalorder %s9, 0
    %p71 = por %p69, %p70
    %p72 = scmp.ne.s32.totalorder %s64, %s66
    %p73 = scmp.eq.s32.totalorder %s14, 3
    %p74 = por %p72, %p73
    %p75 = scmp.ne.s32.totalorder %s66, %s67
    %p76 = scmp.eq.s32.totalorder %s14, 0
    %p77 = por %p75, %p76
    %p78 = scmp.ne.s32.totalorder %s66, %s67
    %p79 = scmp.eq.s32.totalorder %s15, 3
    %p80 = por %p78, %p79
    %p82 = scmp.ne.s32.totalorder %s67, %s81
    %p83 = scmp.eq.s32.totalorder %s15, 0
    %p84 = por %p82, %p83
    %s85 = ssub.s32 %s9, %s16
    %p86 = scmp.eq.s32.totalorder %s85, 0
    %s88 = sadd.s32 %s87, 1
    %s89 = scalar_select %p86, %s87, %s88
    %p92 = pneg %p86
    %p93 = scmp.eq.s32.totalorder %s9, 3
    %p94 = por %p92, %p93
    %p95 = scmp.ne.s32.totalorder %s87, %s90
    %p96 = scmp.eq.s32.totalorder %s9, 0
    %p97 = por %p95, %p96
    %p98 = scmp.ne.s32.totalorder %s87, %s90
    %p99 = scmp.eq.s32.totalorder %s14, 3
    %p100 = por %p98, %p99
    %p101 = scmp.ne.s32.totalorder %s90, %s91
    %p102 = scmp.eq.s32.totalorder %s14, 0
    %p103 = por %p101, %p102
    %p104 = scmp.ne.s32.totalorder %s90, %s91
    %p105 = scmp.eq.s32.totalorder %s15, 3
    %p106 = por %p104, %p105
    %p108 = scmp.ne.s32.totalorder %s91, %s107
    %p109 = scmp.eq.s32.totalorder %s15, 0
    %p110 = por %p108, %p109
    %p111 = scmp.le.s32.totalorder 1, %s9
    %p112 = scmp.lt.s32.totalorder %s9, 5
    %p113 = pnand %p111, %p112
    %p114 = pneg %p113
    // Predicated region
    $region9: #{basic_block_forward_nhwc.2} parent=5 // pred_check
      _
    $region10: #{basic_block_forward_nhwc.2} parent=5 // pred_check_branch
      %116 = sbr.rel (%p113) target = $region12
    $region11: #{basic_block_forward_nhwc.2} parent=5 // pred_region
      %s117 = ssub.s32 %s9, 1
      // Predicated region
      $region13: #{basic_block_forward_nhwc.2} parent=11 // pred_check
        %p118 = pneg %p56
      $region14: #{basic_block_forward_nhwc.2} parent=11 // pred_check_branch
        %120 = sbr.rel (%p118) target = $region16
      $region15: #{basic_block_forward_nhwc.2} parent=11 // pred_region
        _
      $region16: #{basic_block_forward_nhwc.2} parent=11 // pred_fallthru
        _
      // Predicated region
      $region17: #{basic_block_forward_nhwc.2} parent=11 // pred_check
        %p121 = pneg %p77
      $region18: #{basic_block_forward_nhwc.2} parent=11 // pred_check_branch
        %123 = sbr.rel (%p121) target = $region20
      $region19: #{basic_block_forward_nhwc.2} parent=11 // pred_region
        _
      $region20: #{basic_block_forward_nhwc.2} parent=11 // pred_fallthru
        _
    $region12: #{basic_block_forward_nhwc.2} parent=5 // pred_fallthru
      _
    %p124 = scmp.lt.s32.totalorder %s9, 4
    // Predicated region
    $region21: #{basic_block_forward_nhwc.2} parent=5 // pred_check
      %p125 = pneg %p124
    $region22: #{basic_block_forward_nhwc.2} parent=5 // pred_check_branch
      %127 = sbr.rel (%p125) target = $region24
    $region23: #{basic_block_forward_nhwc.2} parent=5 // pred_region
      // Predicated region
      $region25: #{basic_block_forward_nhwc.2} parent=23 // pred_check
        %p128 = pneg %p29
      $region26: #{basic_block_forward_nhwc.2} parent=23 // pred_check_branch
        %130 = sbr.rel (%p128) target = $region28
      $region27: #{basic_block_forward_nhwc.2} parent=23 // pred_region
        %s131 = smul.u32 4, %s9
        %p132 = scmp.lt.s32.totalorder %s131, 15
        %s133 = scalar_select %p132, %s131, 15
        %s134 = smul.addr %s133, 4
        %s135 = scalar_lea.vmem %s0, %s134
        %s136 = smul.u32 4, %s9
      $region28: #{basic_block_forward_nhwc.2} parent=23 // pred_fallthru
        _
    $region24: #{basic_block_forward_nhwc.2} parent=5 // pred_fallthru
      _
    %p137 = scmp.le.s32.totalorder 1, %s9
    %p138 = scmp.lt.s32.totalorder %s9, 5
    %p139 = pnand %p137, %p138
    %p140 = pneg %p139
    // Predicated region
    $region29: #{basic_block_forward_nhwc.2} parent=5 // pred_check
      _
    $region30: #{basic_block_forward_nhwc.2} parent=5 // pred_check_branch
      %142 = sbr.rel (%p139) target = $region32
    $region31: #{basic_block_forward_nhwc.2} parent=5 // pred_region
      %s143 = ssub.s32 %s9, 1
      %s144 = smul.u32 4, %s14
      %p145 = scmp.lt.s32.totalorder %s144, 15
      %s146 = scalar_select %p145, %s144, 15
      %s147 = smul.addr %s146, 4
      %s148 = scalar_lea.vmem %s0, %s147
      %p149 = pneg %p35
      %p150 = pneg %p32
      %p151 = pneg %p56
      %p152 = pneg %p53
      %p153 = pneg %p77
      %p154 = pneg %p74
      %p155 = pneg %p103
      %p156 = pneg %p100
      %s157 = smul.u32 4, %s14
      %p158 = scmp.lt.s32.totalorder %s157, 15
      %s159 = scalar_select %p158, %s157, 15
      %s160 = smul.addr %s159, 4
      %s161 = scalar_lea.vmem %s3, %s160
      %s162 = smul.u32 4, %s14
      %p163 = scmp.lt.s32.totalorder %s162, 15
      %s164 = scalar_select %p163, %s162, 15
      %s165 = smul.addr %s164, 4
      %s166 = scalar_lea.vmem %s0, %s165
      %s167 = smul.u32 4, %s14
      %s168 = smul.u32 4, %s14
      %p169 = scmp.lt.s32.totalorder %s168, 15
      %s170 = scalar_select %p169, %s168, 15
      %s171 = smul.addr %s170, 4
      %s172 = scalar_lea.vmem %s3, %s171
      %s173 = smul.u32 4, %s14
      %v175 = vld [vmem:[%s166] sm:$0xf]
      %v176 = vld [vmem:[%s166 + $0x4] sm:$0xf]
      %v177 = vld [vmem:[%s166 + $0x8] sm:$0xf]
      %v178 = vld [vmem:[%s166 + $0xc] sm:$0xf]
      %v179 = vld [vmem:[%s1] sm:$0xf]
      %v180 = vld [vmem:[%s1 + $0x4] sm:$0xf]
      %v181 = vld [vmem:[%s1 + $0x8] sm:$0xf]
      %v182 = vld [vmem:[%s1 + $0xc] sm:$0xf]
      %v183 = vld [vmem:[%s1 + $0x10] sm:$0x3]
      %v184 = vld [vmem:[%s2] sm:$0x1]
      %v186 = vlaneseq
      %v187 = vshrl.u32 %v186, 7
      %v188 = vsub.s32 0, %v187
      %v189 = vrot.slane %v184, %v188
      %v195 = vunpack.c.l.b16 %v175
      %v196 = vunpack.c.l.b16 %v176
      %v197 = vunpack.c.l.b16 %v177
      %v198 = vunpack.c.l.b16 %v178
      %v199 = vpack.c.b16 %v196, %v195
      %v200 = vpack.c.b16 %v198, %v197
      %v206 = vunpack.c.l.b16 %v179
      %v207 = vunpack.c.l.b16 %v180
      %v208 = vunpack.c.l.b16 %v181
      %v209 = vunpack.c.l.b16 %v182
      %v210 = vunpack.c.l.b16 %v183
      %v211 = vpack.c.b16 %v207, %v206
      %v212 = vpack.c.b16 %v209, %v208
      %v213 = vpack.c.b16 %v210, %v210
      %vm216 = vcmask 293888
      %v218 = vsel %vm216, %v199, 0
      %v221 = vsel %vm216, %v200, 0
      %vm223 = vcmask 1041408
      %v225 = vsel %vm223, %v213, 0
      %227 = vmatprep.subr.bf16.mxu0 0
      %228 = vmatpush1.bf16.msra.mxu0 %v211
      %229 = vmatprep.subr.bf16.mxu0 0
      %230 = vmatpush1.bf16.msra.mxu0 %v212
      %231 = vmatprep.subr.bf16.mxu0 0
      %232 = vmatpush1.bf16.msra.mxu0 %v225
      %233 = vmatprep.subr.bf16.mxu0 0
      %234 = vmatpush1.bf16.msra.mxu0 0
      %235 = vmatprep.subr.bf16.mxu0 0
      %236 = vmatpush1.bf16.msra.mxu0 0
      %237 = vmatprep.subr.bf16.mxu0 0
      %238 = vmatpush1.bf16.msra.mxu0 0
      %239 = vmatprep.subr.bf16.mxu0 0
      %240 = vmatpush1.bf16.msra.mxu0 0
      %241 = vmatprep.subr.bf16.mxu0 0
      %242 = vmatpush1.bf16.msra.mxu0 0
      %243 = vmatprep.subr.bf16.mxu0 0
      %244 = vmatpush1.bf16.msra.mxu0 0
      %245 = vmatprep.subr.bf16.mxu0 0
      %246 = vmatpush1.bf16.msra.mxu0 0
      %247 = vmatprep.subr.bf16.mxu0 0
      %248 = vmatpush1.bf16.msra.mxu0 0
      %249 = vmatprep.subr.bf16.mxu0 0
      %250 = vmatpush1.bf16.msra.mxu0 0
      %251 = vmatprep.subr.bf16.mxu0 0
      %252 = vmatpush1.bf16.msra.mxu0 0
      %253 = vmatprep.subr.bf16.mxu0 0
      %254 = vmatpush1.bf16.msra.mxu0 0
      %255 = vmatprep.subr.bf16.mxu0 0
      %256 = vmatpush1.bf16.msra.mxu0 0
      %257 = vmatprep.subr.bf16.mxu0 0
      %258 = vmatpush1.bf16.msra.mxu0 0
      %259 = vmatprep.mubr.bf16.mxu0 0
      %260 = vmatmul.mubr.bf16.gmra.mrb[0].mxu0 %v218
      %v261 = vpop.f32.mrb[0].mxu0
      %v262 = vadd.f32 %v189, %v261
      %v263 = vpop.f32.mrb[0].mxu0
      %v264 = vpop.f32.mrb[0].mxu0
      %v265 = vadd.f32 %v189, %v264
      %v266 = vpop.f32.mrb[0].mxu0
      %267 = vmatprep.mubr.bf16.mxu0 0
      %268 = vmatmul.mubr.bf16.gmra.mrb[0].mxu0 %v221
      %v269 = vpop.f32.mrb[0].mxu0
      %v270 = vadd.f32 %v189, %v269
      %v271 = vpop.f32.mrb[0].mxu0
      %v272 = vpop.f32.mrb[0].mxu0
      %v273 = vadd.f32 %v189, %v272
      %v274 = vpop.f32.mrb[0].mxu0
      %275 = vdwg.mxu0
      %v276 = vmax.f32 %v262, 0.0
      %v277 = vmax.f32 %v265, 0.0
      %v278 = vmax.f32 %v270, 0.0
      %v279 = vmax.f32 %v273, 0.0
      %v280 = vpack.c.bf16 %v277, %v276
      %v281 = vpack.c.bf16 %v279, %v278
      %v284 = vunpack.c.l.b16 %v280
      %v285 = vunpack.c.h.b16 %v280
      %v286 = vunpack.c.l.b16 %v281
      %v287 = vunpack.c.h.b16 %v281
      %v288 = vpack.c.b16 %v284, %v284
      %v289 = vpack.c.b16 %v285, %v285
      %v290 = vpack.c.b16 %v286, %v286
      %v291 = vpack.c.b16 %v287, %v287
      %296 = vst [vmem:[%s172] sm:$0xf] %v288
      %297 = vst [vmem:[%s172 + $0x4] sm:$0xf] %v289
      %298 = vst [vmem:[%s172 + $0x8] sm:$0xf] %v290
      %299 = vst [vmem:[%s172 + $0xc] sm:$0xf] %v291
      %s300 = smul.u32 4, %s14
      %p301 = scmp.lt.s32.totalorder %s300, 15
      %s302 = scalar_select %p301, %s300, 15
      %s303 = smul.addr %s302, 4
      %s304 = scalar_lea.vmem %s3, %s303
      // Predicated region
      $region33: #{basic_block_forward_nhwc.2} parent=31 // pred_check
        %p305 = pneg %p100
      $region34: #{basic_block_forward_nhwc.2} parent=31 // pred_check_branch
        %307 = sbr.rel (%p305) target = $region36
      $region35: #{basic_block_forward_nhwc.2} parent=31 // pred_region
        %s308 = smul.u32 4, %s14
      $region36: #{basic_block_forward_nhwc.2} parent=31 // pred_fallthru
        _
    $region32: #{basic_block_forward_nhwc.2} parent=5 // pred_fallthru
      _
    %p309 = scmp.le.s32.totalorder 2, %s9
    // Predicated region
    $region37: #{basic_block_forward_nhwc.2} parent=5 // pred_check
      %p310 = pneg %p309
    $region38: #{basic_block_forward_nhwc.2} parent=5 // pred_check_branch
      %312 = sbr.rel (%p310) target = $region40
    $region39: #{basic_block_forward_nhwc.2} parent=5 // pred_region
      %s313 = ssub.s32 %s9, 2
      // Predicated region
      $region41: #{basic_block_forward_nhwc.2} parent=39 // pred_check
        %p314 = pneg %p106
      $region42: #{basic_block_forward_nhwc.2} parent=39 // pred_check_branch
        %316 = sbr.rel (%p314) target = $region44
      $region43: #{basic_block_forward_nhwc.2} parent=39 // pred_region
        %s317 = smul.u32 4, %s15
        %p318 = scmp.lt.s32.totalorder %s317, 15
        %s319 = scalar_select %p318, %s317, 15
        %s320 = smul.addr %s319, 4
        %s321 = scalar_lea.vmem %s3, %s320
      $region44: #{basic_block_forward_nhwc.2} parent=39 // pred_fallthru
        _
    $region40: #{basic_block_forward_nhwc.2} parent=5 // pred_fallthru
      _
  $region6: #{basic_block_forward_nhwc.2} parent=0 // loop_footer
    %s13 = sadd.s32 1, %s9
  $region7: #{basic_block_forward_nhwc.2} parent=0 // loop_footer_branch
    %8 = sbr.rel target = $region3
  $region8: #{basic_block_forward_nhwc.2} parent=0 // loop_exit
    _

// kernel: basic_block_forward_nhwc.3
$region0: #{basic_block_forward_nhwc.3}
  #allocation0 [shape = 'u32[]', space=smem, size = 0x4, offset = 0x4, fixed_abs, tag = 'smem constant byte address 0x4 - core index']
  #allocation1 [shape = 'u32[144,128]{1,0:T(1,128)}', space=vmem, size = 0x12000, scoped, tag = 'internal scratch']
  %s0 = inlined_call_operand.vmem [shape: bf16[128,76], index: 0, kind: input, shape index: {}]
  %s1 = inlined_call_operand.vmem [shape: bf16[76,128], index: 1, kind: input, shape index: {}]
  %s2 = inlined_call_operand.vmem [shape: f32[1,128], index: 2, kind: input, shape index: {}]
  %s3 = inlined_call_operand.hbm [shape: bf16[128,128], index: 3, kind: output, shape index: {}]
  %s4 = sld [smem:[#allocation0]]
  $region45: #{basic_block_forward_nhwc.3} parent=0
    _
  %s6 = ssub.s32 1, %s4
  %s7 = scalar_select 0, %s6, %s4
  $region1: #{basic_block_forward_nhwc.3} parent=0
    #allocation2 [shape = 'u8[16384]{0}', space=vmem, size = 0x4000, scoped, tag = 'output window, operand 0']
    #allocation3 [shape = 's32[2]{0}', space=sflag, size = 0x8, scoped, tag = 'scoped memory for basic_block_forward_nhwc.3']
    %8 = vsyncpa [#allocation3], 0
    %s9 = scalar_lea.sflag [#allocation3], 1
    %10 = vsyncpa %s9, 0
    loop: start=0, step=1, limit=6
    $region2: #{basic_block_forward_nhwc.3} parent=1 // loop_pre_header
      _
    $region3: #{basic_block_forward_nhwc.3} parent=1 // loop_header
      %s12 = sphi 0, %s16
      %p13 = scmp.ge.s32.totalorder %s12, 6
      %s22 = sphi 0, %s24
      %s25 = sphi 0, %s22
      %s26 = sphi 0, %s25
      %s42 = sphi 0, %s26
      %s46 = sphi 0, %s46
      %s48 = sphi 0, %s46
      %s49 = sphi 0, %s48
      %s63 = sphi 0, %s49
      %s67 = sphi 0, %s67
      %s69 = sphi 0, %s67
      %s70 = sphi 0, %s69
      %s84 = sphi 0, %s70
      %s90 = sphi 0, %s92
      %s93 = sphi 0, %s90
      %s94 = sphi 0, %s93
      %s110 = sphi 0, %s94
    $region4: #{basic_block_forward_nhwc.3} parent=1 // loop_header_branch
      %15 = sbr.rel (%p13) target = $region8
    $region5: #{basic_block_forward_nhwc.3} parent=1 // loop_body
      %s17 = ssub.s32 %s12, 1
      %s18 = ssub.s32 %s12, 2
      %s19 = sadd.s32 %s12, 1
      %s20 = ssub.s32 %s12, %s19
      %p21 = scmp.eq.s32.totalorder %s20, 0
      %s23 = sadd.s32 %s22, 1
      %s24 = scalar_select %p21, %s22, %s23
      %p27 = pneg %p21
      %p28 = scmp.eq.s32.totalorder %s12, 3
      %p29 = por %p27, %p28
      %p30 = scmp.ne.s32.totalorder %s22, %s25
      %p31 = scmp.eq.s32.totalorder %s12, 0
      %p32 = por %p30, %p31
      %p33 = scmp.ne.s32.totalorder %s22, %s25
      %p34 = scmp.eq.s32.totalorder %s17, 3
      %p35 = por %p33, %p34
      %p36 = scmp.ne.s32.totalorder %s25, %s26
      %p37 = scmp.eq.s32.totalorder %s17, 0
      %p38 = por %p36, %p37
      %p39 = scmp.ne.s32.totalorder %s25, %s26
      %p40 = scmp.eq.s32.totalorder %s18, 3
      %p41 = por %p39, %p40
      %p43 = scmp.ne.s32.totalorder %s26, %s42
      %p44 = scmp.eq.s32.totalorder %s18, 0
      %p45 = por %p43, %p44
      %s47 = sadd.s32 %s46, 1
      %p50 = scmp.eq.s32.totalorder %s12, 3
      %p51 = scmp.ne.s32.totalorder %s46, %s48
      %p52 = scmp.eq.s32.totalorder %s12, 0
      %p53 = por %p51, %p52
      %p54 = scmp.ne.s32.totalorder %s46, %s48
      %p55 = scmp.eq.s32.totalorder %s17, 3
      %p56 = por %p54, %p55
      %p57 = scmp.ne.s32.totalorder %s48, %s49
      %p58 = scmp.eq.s32.totalorder %s17, 0
      %p59 = por %p57, %p58
      %p60 = scmp.ne.s32.totalorder %s48, %s49
      %p61 = scmp.eq.s32.totalorder %s18, 3
      %p62 = por %p60, %p61
      %p64 = scmp.ne.s32.totalorder %s49, %s63
      %p65 = scmp.eq.s32.totalorder %s18, 0
      %p66 = por %p64, %p65
      %s68 = sadd.s32 %s67, 1
      %p71 = scmp.eq.s32.totalorder %s12, 3
      %p72 = scmp.ne.s32.totalorder %s67, %s69
      %p73 = scmp.eq.s32.totalorder %s12, 0
      %p74 = por %p72, %p73
      %p75 = scmp.ne.s32.totalorder %s67, %s69
      %p76 = scmp.eq.s32.totalorder %s17, 3
      %p77 = por %p75, %p76
      %p78 = scmp.ne.s32.totalorder %s69, %s70
      %p79 = scmp.eq.s32.totalorder %s17, 0
      %p80 = por %p78, %p79
      %p81 = scmp.ne.s32.totalorder %s69, %s70
      %p82 = scmp.eq.s32.totalorder %s18, 3
      %p83 = por %p81, %p82
      %p85 = scmp.ne.s32.totalorder %s70, %s84
      %p86 = scmp.eq.s32.totalorder %s18, 0
      %p87 = por %p85, %p86
      %s88 = ssub.s32 %s12, %s19
      %p89 = scmp.eq.s32.totalorder %s88, 0
      %s91 = sadd.s32 %s90, 1
      %s92 = scalar_select %p89, %s90, %s91
      %p95 = pneg %p89
      %p96 = scmp.eq.s32.totalorder %s12, 3
      %p97 = por %p95, %p96
      %p98 = scmp.ne.s32.totalorder %s90, %s93
      %p99 = scmp.eq.s32.totalorder %s12, 0
      %p100 = por %p98, %p99
      %p101 = scmp.ne.s32.totalorder %s90, %s93
      %p102 = scmp.eq.s32.totalorder %s17, 3
      %p103 = por %p101, %p102
      %p104 = scmp.ne.s32.totalorder %s93, %s94
      %p105 = scmp.eq.s32.totalorder %s17, 0
      %p106 = por %p104, %p105
      %p107 = scmp.ne.s32.totalorder %s93, %s94
      %p108 = scmp.eq.s32.totalorder %s18, 3
      %p109 = por %p107, %p108
      %p111 = scmp.ne.s32.totalorder %s94, %s110
      %p112 = scmp.eq.s32.totalorder %s18, 0
      %p113 = por %p111, %p112
      %p114 = scmp.le.s32.totalorder 1, %s12
      %p115 = scmp.lt.s32.totalorder %s12, 5
      %p116 = pnand %p114, %p115
      %p117 = pneg %p116
      // Predicated region
      $region9: #{basic_block_forward_nhwc.3} parent=5 // pred_check
        _
      $region10: #{basic_block_forward_nhwc.3} parent=5 // pred_check_branch
        %119 = sbr.rel (%p116) target = $region12
      $region11: #{basic_block_forward_nhwc.3} parent=5 // pred_region
        %s120 = ssub.s32 %s12, 1
        // Predicated region
        $region13: #{basic_block_forward_nhwc.3} parent=11 // pred_check
          %p121 = pneg %p59
        $region14: #{basic_block_forward_nhwc.3} parent=11 // pred_check_branch
          %123 = sbr.rel (%p121) target = $region16
        $region15: #{basic_block_forward_nhwc.3} parent=11 // pred_region
          _
        $region16: #{basic_block_forward_nhwc.3} parent=11 // pred_fallthru
          _
        // Predicated region
        $region17: #{basic_block_forward_nhwc.3} parent=11 // pred_check
          %p124 = pneg %p80
        $region18: #{basic_block_forward_nhwc.3} parent=11 // pred_check_branch
          %126 = sbr.rel (%p124) target = $region20
        $region19: #{basic_block_forward_nhwc.3} parent=11 // pred_region
          _
        $region20: #{basic_block_forward_nhwc.3} parent=11 // pred_fallthru
          _
      $region12: #{basic_block_forward_nhwc.3} parent=5 // pred_fallthru
        _
      %p127 = scmp.lt.s32.totalorder %s12, 4
      // Predicated region
      $region21: #{basic_block_forward_nhwc.3} parent=5 // pred_check
        %p128 = pneg %p127
      $region22: #{basic_block_forward_nhwc.3} parent=5 // pred_check_branch
        %130 = sbr.rel (%p128) target = $region24
      $region23: #{basic_block_forward_nhwc.3} parent=5 // pred_region
        // Predicated region
        $region25: #{basic_block_forward_nhwc.3} parent=23 // pred_check
          %p131 = pneg %p32
        $region26: #{basic_block_forward_nhwc.3} parent=23 // pred_check_branch
          %133 = sbr.rel (%p131) target = $region28
        $region27: #{basic_block_forward_nhwc.3} parent=23 // pred_region
          %s134 = smul.u32 4, %s12
          %p135 = scmp.lt.s32.totalorder %s134, 15
          %s136 = scalar_select %p135, %s134, 15
          %s137 = smul.addr %s136, 4
          %s138 = scalar_lea.vmem %s0, %s137
          %s139 = smul.u32 4, %s12
        $region28: #{basic_block_forward_nhwc.3} parent=23 // pred_fallthru
          _
      $region24: #{basic_block_forward_nhwc.3} parent=5 // pred_fallthru
        _
      %p140 = scmp.le.s32.totalorder 1, %s12
      %p141 = scmp.lt.s32.totalorder %s12, 5
      %p142 = pnand %p140, %p141
      %p143 = pneg %p142
      // Predicated region
      $region29: #{basic_block_forward_nhwc.3} parent=5 // pred_check
        _
      $region30: #{basic_block_forward_nhwc.3} parent=5 // pred_check_branch
        %145 = sbr.rel (%p142) target = $region32
      $region31: #{basic_block_forward_nhwc.3} parent=5 // pred_region
        %s146 = ssub.s32 %s12, 1
        %s147 = smul.u32 4, %s17
        %p148 = scmp.lt.s32.totalorder %s147, 15
        %s149 = scalar_select %p148, %s147, 15
        %s150 = smul.addr %s149, 4
        %s151 = scalar_lea.vmem %s0, %s150
        %p152 = pneg %p38
        %p153 = pneg %p35
        %p154 = pneg %p59
        %p155 = pneg %p56
        %p156 = pneg %p80
        %p157 = pneg %p77
        %p158 = pneg %p106
        %p159 = pneg %p103
        %s160 = sand.u32 %s93, 1
        %s161 = scalar_lea.sflag [#allocation3], %s160
        %s162 = sand.u32 %s93, 1
        %s163 = smul.addr %s162, 16
        %s164 = scalar_lea.vmem [#allocation2], %s163
        %s165 = smul.u32 4, %s17
        %p166 = scmp.lt.s32.totalorder %s165, 15
        %s167 = scalar_select %p166, %s165, 15
        %s168 = smul.addr %s167, 4
        %s169 = scalar_lea.vmem %s0, %s168
        %s170 = smul.u32 4, %s17
        %s171 = smul.u32 4, %s17
        %v173 = vld [vmem:[%s169] sm:$0xf]
        %v174 = vld [vmem:[%s169 + $0x4] sm:$0xf]
        %v175 = vld [vmem:[%s169 + $0x8] sm:$0xf]
        %v176 = vld [vmem:[%s169 + $0xc] sm:$0xf]
        %v177 = vld [vmem:[%s1] sm:$0xf]
        %v178 = vld [vmem:[%s1 + $0x4] sm:$0xf]
        %v179 = vld [vmem:[%s1 + $0x8] sm:$0xf]
        %v180 = vld [vmem:[%s1 + $0xc] sm:$0xf]
        %v181 = vld [vmem:[%s1 + $0x10] sm:$0xf]
        %v182 = vld [vmem:[%s1 + $0x14] sm:$0xf]
        %v183 = vld [vmem:[%s1 + $0x18] sm:$0xf]
        %v184 = vld [vmem:[%s1 + $0x1c] sm:$0xf]
        %v185 = vld [vmem:[%s1 + $0x20] sm:$0xf]
        %v186 = vld [vmem:[%s1 + $0x24] sm:$0x3]
        %v187 = vld [vmem:[%s2] sm:$0x1]
        %v189 = vlaneseq
        %v190 = vshrl.u32 %v189, 7
        %v191 = vsub.s32 0, %v190
        %v192 = vrot.slane %v187, %v191
        %v198 = vunpack.c.l.b16 %v173
        %v199 = vunpack.c.l.b16 %v174
        %v200 = vunpack.c.l.b16 %v175
        %v201 = vunpack.c.l.b16 %v176
        %v202 = vpack.c.b16 %v199, %v198
        %v203 = vpack.c.b16 %v201, %v200
        %v214 = vunpack.c.l.b16 %v177
        %v215 = vunpack.c.l.b16 %v178
        %v216 = vunpack.c.l.b16 %v179
        %v217 = vunpack.c.l.b16 %v180
        %v218 = vunpack.c.l.b16 %v181
        %v219 = vunpack.c.l.b16 %v182
        %v220 = vunpack.c.l.b16 %v183
        %v221 = vunpack.c.l.b16 %v184
        %v222 = vunpack.c.l.b16 %v185
        %v223 = vunpack.c.l.b16 %v186
        %v224 = vpack.c.b16 %v215, %v214
        %v225 = vpack.c.b16 %v217, %v216
        %v226 = vpack.c.b16 %v219, %v218
        %v227 = vpack.c.b16 %v221, %v220
        %v228 = vpack.c.b16 %v223, %v222
        %vm233 = vcmask 621568
        %v235 = vsel %vm233, %v202, 0
        %v238 = vsel %vm233, %v203, 0
        %vm240 = vcmask 1045504
        %v242 = vsel %vm240, %v228, 0
        %244 = vmatprep.subr.bf16.mxu0 0
        %245 = vmatpush1.bf16.msra.mxu0 %v224
        %246 = vmatprep.subr.bf16.mxu0 0
        %247 = vmatpush1.bf16.msra.mxu0 %v225
        %248 = vmatprep.subr.bf16.mxu0 0
        %249 = vmatpush1.bf16.msra.mxu0 %v226
        %250 = vmatprep.subr.bf16.mxu0 0
        %251 = vmatpush1.bf16.msra.mxu0 %v227
        %252 = vmatprep.subr.bf16.mxu0 0
        %253 = vmatpush1.bf16.msra.mxu0 %v242
        %254 = vmatprep.subr.bf16.mxu0 0
        %255 = vmatpush1.bf16.msra.mxu0 0
        %256 = vmatprep.subr.bf16.mxu0 0
        %257 = vmatpush1.bf16.msra.mxu0 0
        %258 = vmatprep.subr.bf16.mxu0 0
        %259 = vmatpush1.bf16.msra.mxu0 0
        %260 = vmatprep.subr.bf16.mxu0 0
        %261 = vmatpush1.bf16.msra.mxu0 0
        %262 = vmatprep.subr.bf16.mxu0 0
        %263 = vmatpush1.bf16.msra.mxu0 0
        %264 = vmatprep.subr.bf16.mxu0 0
        %265 = vmatpush1.bf16.msra.mxu0 0
        %266 = vmatprep.subr.bf16.mxu0 0
        %267 = vmatpush1.bf16.msra.mxu0 0
        %268 = vmatprep.subr.bf16.mxu0 0
        %269 = vmatpush1.bf16.msra.mxu0 0
        %270 = vmatprep.subr.bf16.mxu0 0
        %271 = vmatpush1.bf16.msra.mxu0 0
        %272 = vmatprep.subr.bf16.mxu0 0
        %273 = vmatpush1.bf16.msra.mxu0 0
        %274 = vmatprep.subr.bf16.mxu0 0
        %275 = vmatpush1.bf16.msra.mxu0 0
        %276 = vmatprep.mubr.bf16.mxu0 0
        %277 = vmatmul.mubr.bf16.gmra.mrb[0].mxu0 %v235
        %v278 = vpop.f32.mrb[0].mxu0
        %v279 = vadd.f32 %v192, %v278
        %v280 = vpop.f32.mrb[0].mxu0
        %v281 = vpop.f32.mrb[0].mxu0
        %v282 = vadd.f32 %v192, %v281
        %v283 = vpop.f32.mrb[0].mxu0
        %284 = vmatprep.mubr.bf16.mxu0 0
        %285 = vmatmul.mubr.bf16.gmra.mrb[0].mxu0 %v238
        %v286 = vpop.f32.mrb[0].mxu0
        %v287 = vadd.f32 %v192, %v286
        %v288 = vpop.f32.mrb[0].mxu0
        %v289 = vpop.f32.mrb[0].mxu0
        %v290 = vadd.f32 %v192, %v289
        %v291 = vpop.f32.mrb[0].mxu0
        %292 = vdwg.mxu0
        %v293 = vmax.f32 %v279, 0.0
        %v294 = vmax.f32 %v282, 0.0
        %v295 = vmax.f32 %v287, 0.0
        %v296 = vmax.f32 %v290, 0.0
        %v297 = vpack.c.bf16 %v294, %v293
        %v298 = vpack.c.bf16 %v296, %v295
        %v301 = vunpack.c.l.b16 %v297
        %v302 = vunpack.c.h.b16 %v297
        %v303 = vunpack.c.l.b16 %v298
        %v304 = vunpack.c.h.b16 %v298
        %v305 = vpack.c.b16 %v301, %v301
        %v306 = vpack.c.b16 %v302, %v302
        %v307 = vpack.c.b16 %v303, %v303
        %v308 = vpack.c.b16 %v304, %v304
        %313 = vst [vmem:[%s164] sm:$0xf] %v305
        %314 = vst [vmem:[%s164 + $0x4] sm:$0xf] %v306
        %315 = vst [vmem:[%s164 + $0x8] sm:$0xf] %v307
        %316 = vst [vmem:[%s164 + $0xc] sm:$0xf] %v308
        %s317 = sand.u32 %s93, 1
        %s318 = scalar_lea.sflag [#allocation3], %s317
        %s319 = sand.u32 %s93, 1
        %s320 = smul.addr %s319, 16
        %s321 = scalar_lea.vmem [#allocation2], %s320
        // Predicated region
        $region33: #{basic_block_forward_nhwc.3} parent=31 // pred_check
          %p322 = pneg %p103
        $region34: #{basic_block_forward_nhwc.3} parent=31 // pred_check_branch
          %324 = sbr.rel (%p322) target = $region36
        $region35: #{basic_block_forward_nhwc.3} parent=31 // pred_region
          %s325 = smul.u32 4, %s17
          %s327 = ssub.s32 256, 256
          %328 = vsyncadd %s318, %s327
          %s329 = smul.addr %s325, 64
          %s330 = scalar_lea.hbm %s3, %s329
          %s331 = sshll.u32 %s321, 4
          %s332 = int_to_ptr.vmem [resolvable:$true] %s331
          %337 = dma.vmem_to_hbm [thread:$0]  %s332, 256, %s330, %s318, 64, 64, 4
        $region36: #{basic_block_forward_nhwc.3} parent=31 // pred_fallthru
          _
      $region32: #{basic_block_forward_nhwc.3} parent=5 // pred_fallthru
        _
      %p338 = scmp.le.s32.totalorder 2, %s12
      // Predicated region
      $region37: #{basic_block_forward_nhwc.3} parent=5 // pred_check
        %p339 = pneg %p338
      $region38: #{basic_block_forward_nhwc.3} parent=5 // pred_check_branch
        %341 = sbr.rel (%p339) target = $region40
      $region39: #{basic_block_forward_nhwc.3} parent=5 // pred_region
        %s342 = ssub.s32 %s12, 2
        // Predicated region
        $region41: #{basic_block_forward_nhwc.3} parent=39 // pred_check
          %p343 = pneg %p109
        $region42: #{basic_block_forward_nhwc.3} parent=39 // pred_check_branch
          %345 = sbr.rel (%p343) target = $region44
        $region43: #{basic_block_forward_nhwc.3} parent=39 // pred_region
          %s346 = sand.u32 %s94, 1
          %s347 = scalar_lea.sflag [#allocation3], %s346
          %s348 = sand.u32 %s94, 1
          %s349 = smul.addr %s348, 16
          %s350 = scalar_lea.vmem [#allocation2], %s349
          %351 = dma.done %s347, 256
        $region44: #{basic_block_forward_nhwc.3} parent=39 // pred_fallthru
          _
      $region40: #{basic_block_forward_nhwc.3} parent=5 // pred_fallthru
        _
    $region6: #{basic_block_forward_nhwc.3} parent=1 // loop_footer
      %s16 = sadd.s32 1, %s12
    $region7: #{basic_block_forward_nhwc.3} parent=1 // loop_footer_branch
      %11 = sbr.rel target = $region3
    $region8: #{basic_block_forward_nhwc.3} parent=1 // loop_exit
      _
    %352 = vsyncpa [#allocation3], 1
    %s353 = scalar_lea.sflag [#allocation3], 1
    %354 = vsyncpa %s353, 1

</llo_original>
